<compile_context>
chip_gen: v5e
topology: v5e:2x2
jax: 0.10.0
libtpu: 0.0.40
codegen_flags: <defaults>
</compile_context>

<pallas_src>
import jax
import jax.numpy as jnp
from jax.experimental import pallas as pl
from jax.experimental.pallas import tpu as pltpu


# ----------------------------- kernel bodies -------------------------------


def _plain_kernel(x_ref, o_ref):
    # x_ref: (BN, C, THW) -> o_ref: (BN, THW, C); single whole-block transpose,
    # output lane-dense on the embed_dim axis.
    o_ref[...] = jnp.transpose(x_ref[...], (0, 2, 1))


def _make_norm_kernel(eps):
    def kernel(x_ref, g_ref, b_ref, o_ref):
        # Transpose in the native dtype, upcast to f32 only afterwards.
        xt = jnp.transpose(x_ref[...], (0, 2, 1)).astype(jnp.float32)  # (BN, THW, C)
        mean = jnp.mean(xt, axis=-1, keepdims=True)
        ctr = xt - mean
        var = jnp.mean(ctr * ctr, axis=-1, keepdims=True)
        # gamma/beta: read + cast once per grid step (hoisted out of any loop).
        g = g_ref[0].astype(jnp.float32)                               # (C,)
        b = b_ref[0].astype(jnp.float32)                               # (C,)
        y = ctr * jax.lax.rsqrt(var + eps) * g + b
        o_ref[...] = y.astype(o_ref.dtype)
    return kernel


# ----------------------------- tiling policy -------------------------------


def _vmem_capacity_bytes():
    try:
        info = pltpu.get_tpu_info()
        cap = getattr(info, "vmem_capacity_bytes", None)
        if cap:
            return int(cap)
    except Exception:
        pass
    return 128 * 1024 * 1024  # v5e / v6e default


def _choose_tiles(n, c, hw, itemsize, with_norm, vmem_cap):
    """Pick (BN, THW) so the REAL working set of one grid step fits the budget.

    Per element: 2x input block + 2x output block (double-buffered, native
    dtype) plus ~3 f32 temporaries (xt, ctr, y) when LayerNorm is fused.
    """
    bytes_per_elem = 4 * itemsize + (12 if with_norm else 0)
    budget = min(vmem_cap // 6, 16 * 1024 * 1024)

    def fits(bn, thw):
        return bn * thw * c * bytes_per_elem <= budget

    if fits(1, hw):
        # Preferred: full spatial extent (fully contiguous per-batch DMA),
        # tile over batch.
        thw = hw
        bn = 1
        for d in range(2, n + 1):
            if n % d == 0 and fits(d, hw):
                bn = d
        if bn == n and n > 1:
            # Keep >= 2 grid steps so a v7x megacore can split the work.
            bn = max(d for d in range(1, n) if n % d == 0)
    else:
        bn = 1
        if hw % 128 == 0:
            cands = [d for d in range(128, hw, 128) if hw % d == 0]
            fitting = [t for t in cands if fits(1, t)]
            thw = max(fitting) if fitting else 128
        else:
            # Lane rule: a partial spatial tile must be a multiple of 128, so a
            # non-aligned HW forces the full extent; vmem_limit is raised below.
            thw = hw

    if n // bn == 1 and hw // thw == 1 and thw % 256 == 0:
        # Still a 1x1 grid: split the spatial axis so both v7x cores get work.
        thw //= 2

    working = bn * thw * c * bytes_per_elem
    return bn, thw, working


# ------------------------------- wrapper ------------------------------------


def patch_embed(x, gamma=None, beta=None, eps=1e-5):
    """PatchEmbed.forward: (N, C, H, W) -> (N, H*W, C), optional LayerNorm(C)."""
    n, c, h, w = x.shape
    hw = h * w
    x_flat = x.reshape(n, c, hw)
    with_norm = gamma is not None

    vmem_cap = _vmem_capacity_bytes()
    bn, thw, working = _choose_tiles(n, c, hw, x.dtype.itemsize, with_norm, vmem_cap)
    grid = (n // bn, hw // thw)

    in_specs = [pl.BlockSpec((bn, c, thw), lambda bi, si: (bi, 0, si))]
    args = [x_flat]
    if with_norm:
        in_specs += [
            pl.BlockSpec((1, c), lambda bi, si: (0, 0)),
            pl.BlockSpec((1, c), lambda bi, si: (0, 0)),
        ]
        args += [gamma.reshape(1, c), beta.reshape(1, c)]
        kernel = _make_norm_kernel(eps)
    else:
        kernel = _plain_kernel

    # VMEM request derived from the actual working set (with headroom), capped
    # well inside the per-generation capacity (64 MiB on v7x).
    vmem_limit = int(min(vmem_cap * 3 // 4, max(2 * working, 8 * 1024 * 1024)))

    out = pl.pallas_call(
        kernel,
        out_shape=jax.ShapeDtypeStruct((n, hw, c), x.dtype),
        grid_spec=pltpu.PrefetchScalarGridSpec(
            num_scalar_prefetch=0,
            grid=grid,
            in_specs=in_specs,
            out_specs=pl.BlockSpec((bn, thw, c), lambda bi, si: (bi, si, 0)),
        ),
        compiler_params=pltpu.CompilerParams(
            dimension_semantics=("parallel", "parallel"),
            vmem_limit_bytes=vmem_limit,
        ),
    )(*args)
    return out


# ------------------------------ reference -----------------------------------


def _reference(x, gamma=None, beta=None, eps=1e-5):
    n, c, h, w = x.shape
    y = x.reshape(n, c, h * w).transpose(0, 2, 1)          # (N, HW, C)
    if gamma is not None:
        mean = y.mean(axis=-1, keepdims=True)
        var = jnp.square(y - mean).mean(axis=-1, keepdims=True)
        y = (y - mean) / jnp.sqrt(var + eps) * gamma + beta
    return y


if __name__ == "__main__":
    # Small shapes consistent with the module: embed_dim channels, square image.
    N, C, H, W = 2, 32, 16, 16

    key = jax.random.PRNGKey(0)
    kx, kg, kb = jax.random.split(key, 3)
    x = jax.random.normal(kx, (N, C, H, W), dtype=jnp.float32)
    gamma = 1.0 + 0.1 * jax.random.normal(kg, (C,), dtype=jnp.float32)
    beta = 0.1 * jax.random.normal(kb, (C,), dtype=jnp.float32)

    # Path 1: norm_layer=None (module default): pure flatten + transpose.
    out_plain = jax.block_until_ready(patch_embed(x))
    ref_plain = _reference(x)
    assert out_plain.shape == (N, H * W, C), out_plain.shape
    assert jnp.allclose(out_plain, ref_plain, rtol=1e-5, atol=1e-5), (
        float(jnp.abs(out_plain - ref_plain).max()))

    # Path 2: norm_layer=nn.LayerNorm(embed_dim), fused into the same kernel.
    out_norm = jax.block_until_ready(patch_embed(x, gamma, beta))
    ref_norm = _reference(x, gamma, beta)
    assert out_norm.shape == (N, H * W, C), out_norm.shape
    assert jnp.allclose(out_norm, ref_norm, rtol=1e-5, atol=2e-5), (
        float(jnp.abs(out_norm - ref_norm).max()))

    print("KERNEL_OK")
</pallas_src>

<mosaic_0001>
module attributes {stable_mosaic.version = 11 : i64} {
  func.func @_plain_kernel(%arg0: i32, %arg1: i32, %arg2: memref<1x32x256xf32, #tpu.memory_space<vmem>>, %arg3: memref<1x256x32xf32, #tpu.memory_space<vmem>>) attributes {dimension_semantics = [#tpu.dimension_semantics<parallel>, #tpu.dimension_semantics<parallel>], iteration_bounds = array<i64: 2, 1>, scalar_prefetch = 0 : i64, scratch_operands = 0 : i64, tpu.core_type = #tpu.core_type<tc>, window_params = [{transform_indices = @transform_0, window_bounds = array<i64: 1, 32, 256>}, {transform_indices = @transform_1, window_bounds = array<i64: 1, 256, 32>}]} {
    %c0 = arith.constant 0 : index
    %c0_0 = arith.constant 0 : index
    %c0_1 = arith.constant 0 : index
    %0 = vector.load %arg2[%c0, %c0_0, %c0_1] : memref<1x32x256xf32, #tpu.memory_space<vmem>>, vector<1x32x256xf32>
    %1 = tpu.transpose %0, [0, 2, 1] : vector<1x32x256xf32> -> vector<1x256x32xf32>
    %c0_2 = arith.constant 0 : index
    %c0_3 = arith.constant 0 : index
    %c0_4 = arith.constant 0 : index
    %2 = vector.load %arg3[%c0_2, %c0_3, %c0_4] : memref<1x256x32xf32, #tpu.memory_space<vmem>>, vector<1x256x32xf32>
    tpu.vector_store %arg3[%c0_2, %c0_3, %c0_4], %1 {strides = array<i32>} : memref<1x256x32xf32, #tpu.memory_space<vmem>>, vector<1x256x32xf32>,
    return
  }
  func.func @transform_0(%arg0: i32, %arg1: i32) -> (i32, i32, i32) {
    %c0_i32 = arith.constant 0 : i32
    %c0_i32_0 = arith.constant 0 : i32
    return %arg0, %c0_i32, %arg1 : i32, i32, i32
  }
  func.func @transform_1(%arg0: i32, %arg1: i32) -> (i32, i32, i32) {
    %c0_i32 = arith.constant 0 : i32
    %c0_i32_0 = arith.constant 0 : i32
    return %arg0, %arg1, %c0_i32 : i32, i32, i32
  }
}

</mosaic_0001>

<llo_original>
// kernel: tpu_custom_call.1
$region0: #{tpu_custom_call.1}
  #allocation0 [shape = 'u32[]', space=smem, size = 0x4, offset = 0x4, fixed_abs, tag = 'smem constant byte address 0x4 - core index']
  #allocation1 [shape = 'u32[72,128]{1,0:T(1,128)}', space=vmem, size = 0x9000, scoped, tag = 'internal scratch']
  %s0 = inlined_call_operand.hbm [shape: f32[2,32,256], index: 0, kind: input, shape index: {}]
  %s1 = inlined_call_operand.vmem [shape: f32[2,256,32], index: 1, kind: output, shape index: {}]
  %s2 = sld [smem:[#allocation0]]
  $region41: #{tpu_custom_call.1} parent=0
    _
  %s4 = ssub.s32 1, %s2
  %s5 = scalar_select 0, %s4, %s2
  $region1: #{tpu_custom_call.1} parent=0
    #allocation2 [shape = 'u8[65536]{0}', space=vmem, size = 0x10000, scoped, tag = 'input window, operand 0']
    #allocation3 [shape = 's32[2]{0}', space=sflag, size = 0x8, scoped, tag = 'scoped memory for tpu_custom_call.1']
    %6 = vsyncpa [#allocation3], 0
    %s7 = scalar_lea.sflag [#allocation3], 1
    %8 = vsyncpa %s7, 0
    loop: start=0, step=1, limit=4
    $region2: #{tpu_custom_call.1} parent=1 // loop_pre_header
      _
    $region3: #{tpu_custom_call.1} parent=1 // loop_header
      %s10 = sphi 0, %s14
      %p11 = scmp.ge.s32.totalorder %s10, 4
      %s17 = sphi 0, %s29
      %s18 = sphi 0, %s25
      %s19 = sphi 0, %s17
      %s20 = sphi 0, %s18
      %s21 = sphi 0, %s19
      %s22 = sphi 0, %s20
      %s34 = sphi 0, %s36
      %s37 = sphi 0, %s34
      %s38 = sphi 0, %s37
      %s54 = sphi 0, %s38
      %s62 = sphi 0, %s64
      %s65 = sphi 0, %s62
      %s66 = sphi 0, %s65
      %s82 = sphi 0, %s66
    $region4: #{tpu_custom_call.1} parent=1 // loop_header_branch
      %13 = sbr.rel (%p11) target = $region8
    $region5: #{tpu_custom_call.1} parent=1 // loop_body
      %s15 = ssub.s32 %s10, 1
      %s16 = ssub.s32 %s10, 2
      %s23 = sadd.s32 1, %s18
      %p24 = scmp.ge.s32.totalorder %s23, 1
      %s25 = scalar_select %p24, 0, %s23
      %s26 = sadd.s32 1, %s17
      %s27 = scalar_select %p24, %s26, %s17
      %p28 = scmp.ge.s32.totalorder %s27, 2
      %s29 = scalar_select %p28, 0, %s27
      %s30 = ssub.s32 %s17, %s29
      %s31 = ssub.s32 %s18, %s25
      %s32 = sor.u32 %s30, %s31
      %p33 = scmp.eq.s32.totalorder %s32, 0
      %s35 = sadd.s32 %s34, 1
      %s36 = scalar_select %p33, %s34, %s35
      %p39 = pneg %p33
      %p40 = scmp.eq.s32.totalorder %s10, 1
      %p41 = por %p39, %p40
      %p42 = scmp.ne.s32.totalorder %s34, %s37
      %p43 = scmp.eq.s32.totalorder %s10, 0
      %p44 = por %p42, %p43
      %p45 = scmp.ne.s32.totalorder %s34, %s37
      %p46 = scmp.eq.s32.totalorder %s15, 1
      %p47 = por %p45, %p46
      %p48 = scmp.ne.s32.totalorder %s37, %s38
      %p49 = scmp.eq.s32.totalorder %s15, 0
      %p50 = por %p48, %p49
      %p51 = scmp.ne.s32.totalorder %s37, %s38
      %p52 = scmp.eq.s32.totalorder %s16, 1
      %p53 = por %p51, %p52
      %p55 = scmp.ne.s32.totalorder %s38, %s54
      %p56 = scmp.eq.s32.totalorder %s16, 0
      %p57 = por %p55, %p56
      %s58 = ssub.s32 %s17, %s29
      %s59 = ssub.s32 %s18, %s25
      %s60 = sor.u32 %s58, %s59
      %p61 = scmp.eq.s32.totalorder %s60, 0
      %s63 = sadd.s32 %s62, 1
      %s64 = scalar_select %p61, %s62, %s63
      %p67 = pneg %p61
      %p68 = scmp.eq.s32.totalorder %s10, 1
      %p69 = por %p67, %p68
      %p70 = scmp.ne.s32.totalorder %s62, %s65
      %p71 = scmp.eq.s32.totalorder %s10, 0
      %p72 = por %p70, %p71
      %p73 = scmp.ne.s32.totalorder %s62, %s65
      %p74 = scmp.eq.s32.totalorder %s15, 1
      %p75 = por %p73, %p74
      %p76 = scmp.ne.s32.totalorder %s65, %s66
      %p77 = scmp.eq.s32.totalorder %s15, 0
      %p78 = por %p76, %p77
      %p79 = scmp.ne.s32.totalorder %s65, %s66
      %p80 = scmp.eq.s32.totalorder %s16, 1
      %p81 = por %p79, %p80
      %p83 = scmp.ne.s32.totalorder %s66, %s82
      %p84 = scmp.eq.s32.totalorder %s16, 0
      %p85 = por %p83, %p84
      %p86 = scmp.le.s32.totalorder 1, %s10
      %p87 = scmp.lt.s32.totalorder %s10, 3
      %p88 = pnand %p86, %p87
      %p89 = pneg %p88
      // Predicated region
      $region9: #{tpu_custom_call.1} parent=5 // pred_check
        _
      $region10: #{tpu_custom_call.1} parent=5 // pred_check_branch
        %91 = sbr.rel (%p88) target = $region12
      $region11: #{tpu_custom_call.1} parent=5 // pred_region
        %s92 = ssub.s32 %s10, 1
      $region12: #{tpu_custom_call.1} parent=5 // pred_fallthru
        _
      %p93 = scmp.lt.s32.totalorder %s10, 2
      // Predicated region
      $region13: #{tpu_custom_call.1} parent=5 // pred_check
        %p94 = pneg %p93
      $region14: #{tpu_custom_call.1} parent=5 // pred_check_branch
        %96 = sbr.rel (%p94) target = $region16
      $region15: #{tpu_custom_call.1} parent=5 // pred_region
        // Predicated region
        $region17: #{tpu_custom_call.1} parent=15 // pred_check
          %p97 = pneg %p44
        $region18: #{tpu_custom_call.1} parent=15 // pred_check_branch
          %99 = sbr.rel (%p97) target = $region20
        $region19: #{tpu_custom_call.1} parent=15 // pred_region
          %s100 = sand.u32 %s34, 1
          %s101 = scalar_lea.sflag [#allocation3], %s100
          %s102 = sand.u32 %s34, 1
          %s103 = smul.addr %s102, 64
          %s104 = scalar_lea.vmem [#allocation2], %s103
          %s105 = smul.u32 2, %s18
          %107 = vsyncadd %s101, 0
          %s108 = smul.addr %s17, 8
          %s109 = sadd.s32 %s105, %s108
          %s110 = smul.addr %s109, 8
          %s111 = scalar_lea.hbm %s0, %s110
          %s112 = sshll.u32 %s111, 4
          %s113 = int_to_ptr.hbm [resolvable:$true] %s112
          %s114 = sshll.u32 %s104, 4
          %s115 = int_to_ptr.vmem [resolvable:$true] %s114
          %120 = dma.hbm_to_vmem [thread:$0]  %s113, 1024, %s115, %s101, 256, 256, 16
        $region20: #{tpu_custom_call.1} parent=15 // pred_fallthru
          _
      $region16: #{tpu_custom_call.1} parent=5 // pred_fallthru
        _
      %p121 = scmp.le.s32.totalorder 1, %s10
      %p122 = scmp.lt.s32.totalorder %s10, 3
      %p123 = pnand %p121, %p122
      %p124 = pneg %p123
      // Predicated region
      $region21: #{tpu_custom_call.1} parent=5 // pred_check
        _
      $region22: #{tpu_custom_call.1} parent=5 // pred_check_branch
        %126 = sbr.rel (%p123) target = $region24
      $region23: #{tpu_custom_call.1} parent=5 // pred_region
        %s127 = ssub.s32 %s10, 1
        %s128 = sand.u32 %s37, 1
        %s129 = scalar_lea.sflag [#allocation3], %s128
        %s130 = sand.u32 %s37, 1
        %s131 = smul.addr %s130, 64
        %s132 = scalar_lea.vmem [#allocation2], %s131
        // Predicated region
        $region25: #{tpu_custom_call.1} parent=23 // pred_check
          %p133 = pneg %p50
        $region26: #{tpu_custom_call.1} parent=23 // pred_check_branch
          %135 = sbr.rel (%p133) target = $region28
        $region27: #{tpu_custom_call.1} parent=23 // pred_region
          %137 = dma.done %s129, 1024
        $region28: #{tpu_custom_call.1} parent=23 // pred_fallthru
          _
        %s138 = sand.u32 %s37, 1
        %s139 = scalar_lea.sflag [#allocation3], %s138
        %s140 = sand.u32 %s37, 1
        %s141 = smul.addr %s140, 64
        %s142 = scalar_lea.vmem [#allocation2], %s141
        %p143 = pneg %p50
        %p144 = pneg %p47
        %p145 = pneg %p78
        %p146 = pneg %p75
        %s147 = smul.u32 32, %s20
        %p148 = scmp.lt.s32.totalorder %s19, 1
        %s149 = scalar_select %p148, %s19, 1
        %p150 = scmp.lt.s32.totalorder %s147, 31
        %s151 = scalar_select %p150, %s147, 31
        %s152 = smul.addr %s149, 32
        %s153 = sadd.s32 %s151, %s152
        %s154 = smul.addr %s153, 8
        %s155 = scalar_lea.vmem %s1, %s154
        %s156 = smul.u32 2, %s20
        %s157 = smul.u32 32, %s20
        %p158 = scmp.lt.s32.totalorder %s19, 1
        %s159 = scalar_select %p158, %s19, 1
        %p160 = scmp.lt.s32.totalorder %s157, 31
        %s161 = scalar_select %p160, %s157, 31
        %s162 = smul.addr %s159, 32
        %s163 = sadd.s32 %s161, %s162
        %s164 = smul.addr %s163, 8
        %s165 = scalar_lea.vmem %s1, %s164
        %s166 = smul.u32 32, %s20
        %v167 = vld [vmem:[%s132] sm:$0xff]
        %v168 = vld [vmem:[%s132 + $0x8] sm:$0xff]
        %v169 = vld [vmem:[%s132 + $0x10] sm:$0xff]
        %v170 = vld [vmem:[%s132 + $0x18] sm:$0xff]
        %v171 = vld [vmem:[%s132 + $0x20] sm:$0xff]
        %v172 = vld [vmem:[%s132 + $0x28] sm:$0xff]
        %v173 = vld [vmem:[%s132 + $0x30] sm:$0xff]
        %v174 = vld [vmem:[%s132 + $0x38] sm:$0xff]
        %175 = vxpose.xlu0.b32.start [1/16] %v167, 128
        %176 = vxpose.xlu0.b32.cont [2/16] %v169, 128
        %177 = vxpose.xlu0.b32.cont [3/16] %v171, 128
        %178 = vxpose.xlu0.b32.cont [4/16] %v173, 128
        %179 = vxpose.xlu0.b32.cont [5/16] 0.0, 128
        %180 = vxpose.xlu0.b32.cont [6/16] 0.0, 128
        %181 = vxpose.xlu0.b32.cont [7/16] 0.0, 128
        %182 = vxpose.xlu0.b32.cont [8/16] 0.0, 128
        %183 = vxpose.xlu0.b32.cont [9/16] 0.0, 128
        %184 = vxpose.xlu0.b32.cont [10/16] 0.0, 128
        %185 = vxpose.xlu0.b32.cont [11/16] 0.0, 128
        %186 = vxpose.xlu0.b32.cont [12/16] 0.0, 128
        %187 = vxpose.xlu0.b32.cont [13/16] 0.0, 128
        %188 = vxpose.xlu0.b32.cont [14/16] 0.0, 128
        %189 = vxpose.xlu0.b32.cont [15/16] 0.0, 128
        %190 = vxpose.xlu0.b32.end [16/16] 0.0, 128
        %v191 = vpop.trf.xlu0
        %v192 = vpop.trf.xlu0
        %v193 = vpop.trf.xlu0
        %v194 = vpop.trf.xlu0
        %v195 = vpop.trf.xlu0
        %v196 = vpop.trf.xlu0
        %v197 = vpop.trf.xlu0
        %v198 = vpop.trf.xlu0
        %v199 = vpop.trf.xlu0
        %v200 = vpop.trf.xlu0
        %v201 = vpop.trf.xlu0
        %v202 = vpop.trf.xlu0
        %v203 = vpop.trf.xlu0
        %v204 = vpop.trf.xlu0
        %v205 = vpop.trf.xlu0
        %v206 = vpop.trf.xlu0
        %207 = vxpose.xlu0.b32.start [1/16] %v168, 128
        %208 = vxpose.xlu0.b32.cont [2/16] %v170, 128
        %209 = vxpose.xlu0.b32.cont [3/16] %v172, 128
        %210 = vxpose.xlu0.b32.cont [4/16] %v174, 128
        %211 = vxpose.xlu0.b32.cont [5/16] 0.0, 128
        %212 = vxpose.xlu0.b32.cont [6/16] 0.0, 128
        %213 = vxpose.xlu0.b32.cont [7/16] 0.0, 128
        %214 = vxpose.xlu0.b32.cont [8/16] 0.0, 128
        %215 = vxpose.xlu0.b32.cont [9/16] 0.0, 128
        %216 = vxpose.xlu0.b32.cont [10/16] 0.0, 128
        %217 = vxpose.xlu0.b32.cont [11/16] 0.0, 128
        %218 = vxpose.xlu0.b32.cont [12/16] 0.0, 128
        %219 = vxpose.xlu0.b32.cont [13/16] 0.0, 128
        %220 = vxpose.xlu0.b32.cont [14/16] 0.0, 128
        %221 = vxpose.xlu0.b32.cont [15/16] 0.0, 128
        %222 = vxpose.xlu0.b32.end [16/16] 0.0, 128
        %v223 = vpop.trf.xlu0
        %v224 = vpop.trf.xlu0
        %v225 = vpop.trf.xlu0
        %v226 = vpop.trf.xlu0
        %v227 = vpop.trf.xlu0
        %v228 = vpop.trf.xlu0
        %v229 = vpop.trf.xlu0
        %v230 = vpop.trf.xlu0
        %v231 = vpop.trf.xlu0
        %v232 = vpop.trf.xlu0
        %v233 = vpop.trf.xlu0
        %v234 = vpop.trf.xlu0
        %v235 = vpop.trf.xlu0
        %v236 = vpop.trf.xlu0
        %v237 = vpop.trf.xlu0
        %v238 = vpop.trf.xlu0
        %vm239 = vcmask 261120
        %240 = vst.msk [vmem:[%s165] sm:$0xff] %vm239, %v191
        %241 = vst.msk [vmem:[%s165 + $0x8] sm:$0xff] %vm239, %v192
        %242 = vst.msk [vmem:[%s165 + $0x10] sm:$0xff] %vm239, %v193
        %243 = vst.msk [vmem:[%s165 + $0x18] sm:$0xff] %vm239, %v194
        %244 = vst.msk [vmem:[%s165 + $0x20] sm:$0xff] %vm239, %v195
        %245 = vst.msk [vmem:[%s165 + $0x28] sm:$0xff] %vm239, %v196
        %246 = vst.msk [vmem:[%s165 + $0x30] sm:$0xff] %vm239, %v197
        %247 = vst.msk [vmem:[%s165 + $0x38] sm:$0xff] %vm239, %v198
        %248 = vst.msk [vmem:[%s165 + $0x40] sm:$0xff] %vm239, %v199
        %249 = vst.msk [vmem:[%s165 + $0x48] sm:$0xff] %vm239, %v200
        %250 = vst.msk [vmem:[%s165 + $0x50] sm:$0xff] %vm239, %v201
        %251 = vst.msk [vmem:[%s165 + $0x58] sm:$0xff] %vm239, %v202
        %252 = vst.msk [vmem:[%s165 + $0x60] sm:$0xff] %vm239, %v203
        %253 = vst.msk [vmem:[%s165 + $0x68] sm:$0xff] %vm239, %v204
        %254 = vst.msk [vmem:[%s165 + $0x70] sm:$0xff] %vm239, %v205
        %255 = vst.msk [vmem:[%s165 + $0x78] sm:$0xff] %vm239, %v206
        %256 = vst.msk [vmem:[%s165 + $0x80] sm:$0xff] %vm239, %v223
        %257 = vst.msk [vmem:[%s165 + $0x88] sm:$0xff] %vm239, %v224
        %258 = vst.msk [vmem:[%s165 + $0x90] sm:$0xff] %vm239, %v225
        %259 = vst.msk [vmem:[%s165 + $0x98] sm:$0xff] %vm239, %v226
        %260 = vst.msk [vmem:[%s165 + $0xa0] sm:$0xff] %vm239, %v227
        %261 = vst.msk [vmem:[%s165 + $0xa8] sm:$0xff] %vm239, %v228
        %262 = vst.msk [vmem:[%s165 + $0xb0] sm:$0xff] %vm239, %v229
        %263 = vst.msk [vmem:[%s165 + $0xb8] sm:$0xff] %vm239, %v230
        %264 = vst.msk [vmem:[%s165 + $0xc0] sm:$0xff] %vm239, %v231
        %265 = vst.msk [vmem:[%s165 + $0xc8] sm:$0xff] %vm239, %v232
        %266 = vst.msk [vmem:[%s165 + $0xd0] sm:$0xff] %vm239, %v233
        %267 = vst.msk [vmem:[%s165 + $0xd8] sm:$0xff] %vm239, %v234
        %268 = vst.msk [vmem:[%s165 + $0xe0] sm:$0xff] %vm239, %v235
        %269 = vst.msk [vmem:[%s165 + $0xe8] sm:$0xff] %vm239, %v236
        %270 = vst.msk [vmem:[%s165 + $0xf0] sm:$0xff] %vm239, %v237
        %271 = vst.msk [vmem:[%s165 + $0xf8] sm:$0xff] %vm239, %v238
        %s272 = smul.u32 32, %s20
        %p273 = scmp.lt.s32.totalorder %s19, 1
        %s274 = scalar_select %p273, %s19, 1
        %p275 = scmp.lt.s32.totalorder %s272, 31
        %s276 = scalar_select %p275, %s272, 31
        %s277 = smul.addr %s274, 32
        %s278 = sadd.s32 %s276, %s277
        %s279 = smul.addr %s278, 8
        %s280 = scalar_lea.vmem %s1, %s279
        // Predicated region
        $region29: #{tpu_custom_call.1} parent=23 // pred_check
          %p281 = pneg %p75
        $region30: #{tpu_custom_call.1} parent=23 // pred_check_branch
          %283 = sbr.rel (%p281) target = $region32
        $region31: #{tpu_custom_call.1} parent=23 // pred_region
          %s284 = smul.u32 32, %s20
        $region32: #{tpu_custom_call.1} parent=23 // pred_fallthru
          _
      $region24: #{tpu_custom_call.1} parent=5 // pred_fallthru
        _
      %p285 = scmp.le.s32.totalorder 2, %s10
      // Predicated region
      $region33: #{tpu_custom_call.1} parent=5 // pred_check
        %p286 = pneg %p285
      $region34: #{tpu_custom_call.1} parent=5 // pred_check_branch
        %288 = sbr.rel (%p286) target = $region36
      $region35: #{tpu_custom_call.1} parent=5 // pred_region
        %s289 = ssub.s32 %s10, 2
        // Predicated region
        $region37: #{tpu_custom_call.1} parent=35 // pred_check
          %p290 = pneg %p81
        $region38: #{tpu_custom_call.1} parent=35 // pred_check_branch
          %292 = sbr.rel (%p290) target = $region40
        $region39: #{tpu_custom_call.1} parent=35 // pred_region
          %s293 = smul.u32 32, %s22
          %p294 = scmp.lt.s32.totalorder %s21, 1
          %s295 = scalar_select %p294, %s21, 1
          %p296 = scmp.lt.s32.totalorder %s293, 31
          %s297 = scalar_select %p296, %s293, 31
          %s298 = smul.addr %s295, 32
          %s299 = sadd.s32 %s297, %s298
          %s300 = smul.addr %s299, 8
          %s301 = scalar_lea.vmem %s1, %s300
        $region40: #{tpu_custom_call.1} parent=35 // pred_fallthru
          _
      $region36: #{tpu_custom_call.1} parent=5 // pred_fallthru
        _
    $region6: #{tpu_custom_call.1} parent=1 // loop_footer
      %s14 = sadd.s32 1, %s10
    $region7: #{tpu_custom_call.1} parent=1 // loop_footer_branch
      %9 = sbr.rel target = $region3
    $region8: #{tpu_custom_call.1} parent=1 // loop_exit
      _
    %302 = vsyncpa [#allocation3], 1
    %s303 = scalar_lea.sflag [#allocation3], 1
    %304 = vsyncpa %s303, 1

</llo_original>
